<compile_context>
chip_gen: v5e
topology: v5e:2x2
jax: 0.10.0
libtpu: 0.0.40
codegen_flags: <defaults>
</compile_context>

<pallas_src>
import functools

import jax
import jax.numpy as jnp
from jax.experimental import pallas as pl
from jax.experimental.pallas import tpu as pltpu


# ----------------------------- kernel ---------------------------------------


def _gate_sum_kernel(x1_ref, x2_ref, w1a_ref, w1b_ref, w2a_ref, w2b_ref,
                     b1_ref, b2_ref, o_ref):
    """Blocks: x1/x2/o: (1, C, T)  (channels on sublanes, pixels on lanes)
               w1a/w1b/w2a/w2b: (C, C) input-split 1x1-conv weights
               b1/b2: (C, 1) biases (broadcast over lanes)."""
    x1 = x1_ref[0]                                    # (C, T)
    x2 = x2_ref[0]                                    # (C, T)

    def gate(wa_ref, wb_ref, b_ref):
        z = (jnp.dot(wa_ref[...], x1, preferred_element_type=jnp.float32)
             + jnp.dot(wb_ref[...], x2, preferred_element_type=jnp.float32)
             + b_ref[...])                            # (C, T) f32
        # sigmoid(z) = 0.5 * tanh(z / 2) + 0.5  -> single EUP op, no divide.
        return 0.5 * jnp.tanh(0.5 * z) + 0.5

    g1 = gate(w1a_ref, w1b_ref, b1_ref)               # sigmoid(conv1([x1,x2]))
    g2 = gate(w2a_ref, w2b_ref, b2_ref)               # sigmoid(conv2([x1,x2]))

    # mode='sum' with w = 1:  g1 * x1 + g2 * x2
    o_ref[0] = (g1 * x1 + g2 * x2).astype(o_ref.dtype)


# --------------------------- tiling helpers ----------------------------------


def _round_up(x, m):
    return ((x + m - 1) // m) * m


def _round_down(x, m):
    return max(m, (x // m) * m)


def _sublane_pad(c, itemsize):
    """Rows a (c, T) tile occupies in VMEM given sublane packing of the dtype."""
    packing = max(1, 4 // itemsize)     # f32 -> 1, bf16 -> 2, int8/fp8 -> 4
    return _round_up(c, 8 * packing)


def _vmem_capacity_bytes():
    """Per-core physical VMEM; conservative fallback if the query fails."""
    try:
        cap = getattr(pltpu.get_tpu_info(), "vmem_capacity_bytes", None)
        if cap:
            return int(cap)
    except Exception:
        pass
    return 64 * 1024 * 1024             # v7x per-TC value (smallest of v5e/v6e/v7x)


# ----------------------------- wrapper ---------------------------------------


@functools.partial(jax.jit, static_argnames=("tile",))
def anatomical_attention_gate_sum(x1, x2, w1, b1, w2, b2, *, tile=None):
    """AnatomicalAttentionGate forward, mode='sum', act='sigmoid'.

    x1, x2 : (N, C, H, W) activations (identical shapes / dtype).
    w1, w2 : (C, 2C) 1x1-conv weights in PyTorch layout (out_ch, in_ch), i.e.
             conv.weight[:, :, 0, 0]. Columns [0:C] act on x1, [C:2C] on x2
             (concat order [x1, x2]).  Wrong layouts are rejected by assert.
    b1, b2 : (C,) biases.
    tile   : optional static override of the spatial (lane) tile size.
    """
    n, c, h, w = x1.shape
    assert x2.shape == x1.shape, "x1/x2 must have identical shapes"
    assert w1.shape == (c, 2 * c) and w2.shape == (c, 2 * c), (
        f"expected PyTorch 1x1-conv layout (C_out, 2*C_in)=({c},{2*c}); "
        f"got {w1.shape} / {w2.shape}")
    assert b1.shape == (c,) and b2.shape == (c,)
    hw = h * w

    # Free, contiguous reshape (no transpose / HBM relayout pass).
    x1r = x1.reshape(n, c, hw)
    x2r = x2.reshape(n, c, hw)

    # Split each gate's weight on the input-channel axis -> no activation concat.
    # Keep params bf16 when activations are bf16 (halves resident-weight VMEM,
    # halves weight HBM traffic); MXU accumulation is f32 either way.
    p_dtype = x1.dtype if x1.dtype == jnp.bfloat16 else jnp.float32
    w1a, w1b = w1[:, :c].astype(p_dtype), w1[:, c:].astype(p_dtype)
    w2a, w2b = w2[:, :c].astype(p_dtype), w2[:, c:].astype(p_dtype)
    b1c = b1.reshape(c, 1).astype(jnp.float32)
    b2c = b2.reshape(c, 1).astype(jnp.float32)

    # ---- Tile selection: byte-budget driven, generation aware --------------
    a_item = jnp.dtype(x1.dtype).itemsize
    p_item = jnp.dtype(p_dtype).itemsize
    c_io = _sublane_pad(c, a_item)        # sublane-padded rows of an IO tile
    c_f32 = _round_up(c, 8)               # rows of an f32 intermediate

    vmem_cap = _vmem_capacity_bytes()
    budget = (vmem_cap * 2) // 5          # ~25 MiB on v7x, ~51 MiB on v5e/v6e

    # Per lane-column VMEM cost of one grid step:
    #   3 IO streams (x1, x2, out) x 2 pipeline buffers
    # + ~6 live f32 (C, T) temporaries inside the body (z's, gates, promotions).
    per_col = 3 * 2 * c_io * a_item + 6 * c_f32 * 4

    # Resident parameter blocks, padded to (sublane, 128) tiles, x2 buffers.
    w_bytes = 2 * (4 * _sublane_pad(c, p_item) * _round_up(c, 128) * p_item
                   + 2 * c_f32 * 128 * 4)

    target_stream_bytes = 2 << 20         # ~2 MiB / input stream / grid step
    t_target = _round_down(target_stream_bytes // (c_io * a_item), 128)
    t_budget = _round_down(max(budget - w_bytes, 128 * per_col) // per_col, 128)
    t = tile if tile is not None else min(t_target, t_budget)
    t = hw if hw <= t else t              # full extent when it fits (also H*W < 128)

    needed = per_col * t + w_bytes
    vmem_limit = int(min(max(8 << 20, needed + needed // 4 + (2 << 20)),
                         vmem_cap - (8 << 20)))

    # Spatial axis FIRST so the v7x 2-TC "parallel" split follows the big axis
    # even when N is 1-2; harmless on single-TC v5e/v6e.
    grid = (pl.cdiv(hw, t), n)

    out = pl.pallas_call(
        _gate_sum_kernel,
        out_shape=jax.ShapeDtypeStruct((n, c, hw), x1.dtype),
        grid_spec=pltpu.PrefetchScalarGridSpec(
            num_scalar_prefetch=0,
            grid=grid,
            in_specs=[
                pl.BlockSpec((1, c, t), lambda s, b: (b, 0, s)),   # x1 tile
                pl.BlockSpec((1, c, t), lambda s, b: (b, 0, s)),   # x2 tile
                pl.BlockSpec((c, c), lambda s, b: (0, 0)),         # w1a (resident)
                pl.BlockSpec((c, c), lambda s, b: (0, 0)),         # w1b
                pl.BlockSpec((c, c), lambda s, b: (0, 0)),         # w2a
                pl.BlockSpec((c, c), lambda s, b: (0, 0)),         # w2b
                pl.BlockSpec((c, 1), lambda s, b: (0, 0)),         # b1
                pl.BlockSpec((c, 1), lambda s, b: (0, 0)),         # b2
            ],
            out_specs=pl.BlockSpec((1, c, t), lambda s, b: (b, 0, s)),  # lane-dense
        ),
        compiler_params=pltpu.CompilerParams(
            dimension_semantics=("parallel", "parallel"),
            vmem_limit_bytes=vmem_limit,
        ),
    )(x1r, x2r, w1a, w1b, w2a, w2b, b1c, b2c)

    return out.reshape(n, c, h, w)


# ----------------------------- reference & test ------------------------------


def _reference(x1, x2, w1, b1, w2, b2):
    """Pure-JAX reference matching the PyTorch forward (mode='sum')."""
    x = jnp.concatenate([x1, x2], axis=1)                       # (N, 2C, H, W)
    y1 = jax.nn.sigmoid(jnp.einsum("oi,nihw->nohw", w1, x,
                                   precision=jax.lax.Precision.HIGHEST)
                        + b1[None, :, None, None])
    y2 = jax.nn.sigmoid(jnp.einsum("oi,nihw->nohw", w2, x,
                                   precision=jax.lax.Precision.HIGHEST)
                        + b2[None, :, None, None])
    return y1 * x1 + y2 * x2


if __name__ == "__main__":
    # Small shapes consistent with the module: spatial_dims=2, C=4, N=2, H=W=16.
    N, C, H, W = 2, 4, 16, 16

    key = jax.random.PRNGKey(0)
    k1, k2, k3, k4, k5, k6 = jax.random.split(key, 6)

    x1 = jax.random.normal(k1, (N, C, H, W), dtype=jnp.float32)
    x2 = jax.random.normal(k2, (N, C, H, W), dtype=jnp.float32)

    # conv1 / conv2 are 1x1 convs: PyTorch weight (C_out, 2C_in, 1, 1) squeezed
    # to (C, 2C); bias (C,).
    w1 = jax.random.normal(k3, (C, 2 * C), dtype=jnp.float32) * 0.1
    b1 = jax.random.normal(k4, (C,), dtype=jnp.float32) * 0.1
    w2 = jax.random.normal(k5, (C, 2 * C), dtype=jnp.float32) * 0.1
    b2 = jax.random.normal(k6, (C,), dtype=jnp.float32) * 0.1

    out = anatomical_attention_gate_sum(x1, x2, w1, b1, w2, b2)
    out = jax.block_until_ready(out)

    ref = _reference(x1, x2, w1, b1, w2, b2)
    assert out.shape == (N, C, H, W)
    assert jnp.allclose(out, ref, atol=1e-4, rtol=1e-4), "mismatch vs reference"

    print("KERNEL_OK")
</pallas_src>

<mosaic_0001>
module attributes {stable_mosaic.version = 11 : i64} {
  func.func @_gate_sum_kernel(%arg0: i32, %arg1: i32, %arg2: memref<1x4x256xf32, #tpu.memory_space<vmem>>, %arg3: memref<1x4x256xf32, #tpu.memory_space<vmem>>, %arg4: memref<4x4xf32, #tpu.memory_space<vmem>>, %arg5: memref<4x4xf32, #tpu.memory_space<vmem>>, %arg6: memref<4x4xf32, #tpu.memory_space<vmem>>, %arg7: memref<4x4xf32, #tpu.memory_space<vmem>>, %arg8: memref<4x1xf32, #tpu.memory_space<vmem>>, %arg9: memref<4x1xf32, #tpu.memory_space<vmem>>, %arg10: memref<1x4x256xf32, #tpu.memory_space<vmem>>) attributes {dimension_semantics = [#tpu.dimension_semantics<parallel>, #tpu.dimension_semantics<parallel>], iteration_bounds = array<i64: 1, 2>, scalar_prefetch = 0 : i64, scratch_operands = 0 : i64, tpu.core_type = #tpu.core_type<tc>, window_params = [{transform_indices = @transform_0, window_bounds = array<i64: 1, 4, 256>}, {transform_indices = @transform_1, window_bounds = array<i64: 1, 4, 256>}, {pipeline_mode = #tpu.pipeline_mode<synchronous>, transform_indices = @transform_2, window_bounds = array<i64: 4, 4>}, {pipeline_mode = #tpu.pipeline_mode<synchronous>, transform_indices = @transform_3, window_bounds = array<i64: 4, 4>}, {pipeline_mode = #tpu.pipeline_mode<synchronous>, transform_indices = @transform_4, window_bounds = array<i64: 4, 4>}, {pipeline_mode = #tpu.pipeline_mode<synchronous>, transform_indices = @transform_5, window_bounds = array<i64: 4, 4>}, {pipeline_mode = #tpu.pipeline_mode<synchronous>, transform_indices = @transform_6, window_bounds = array<i64: 4, 1>}, {pipeline_mode = #tpu.pipeline_mode<synchronous>, transform_indices = @transform_7, window_bounds = array<i64: 4, 1>}, {transform_indices = @transform_8, window_bounds = array<i64: 1, 4, 256>}]} {
    %c0 = arith.constant 0 : index
    %c0_0 = arith.constant 0 : index
    %c0_1 = arith.constant 0 : index
    %0 = vector.load %arg2[%c0, %c0_0, %c0_1] : memref<1x4x256xf32, #tpu.memory_space<vmem>>, vector<1x4x256xf32>
    %1 = vector.shape_cast %0 : vector<1x4x256xf32> to vector<4x256xf32>
    %c0_2 = arith.constant 0 : index
    %c0_3 = arith.constant 0 : index
    %c0_4 = arith.constant 0 : index
    %2 = vector.load %arg3[%c0_2, %c0_3, %c0_4] : memref<1x4x256xf32, #tpu.memory_space<vmem>>, vector<1x4x256xf32>
    %3 = vector.shape_cast %2 : vector<1x4x256xf32> to vector<4x256xf32>
    %c0_5 = arith.constant 0 : index
    %c0_6 = arith.constant 0 : index
    %4 = vector.load %arg4[%c0_5, %c0_6] : memref<4x4xf32, #tpu.memory_space<vmem>>, vector<4x4xf32>
    %cst = arith.constant dense<0.000000e+00> : vector<4x256xf32>
    %5 = tpu.matmul %4, %1, %cst {dimension_numbers = #tpu.dot_dimension_numbers<[1], [0], [0], [1], [0, 0, 1, 1], [], []>} : vector<4x4xf32>, vector<4x256xf32>, vector<4x256xf32> -> vector<4x256xf32>
    %c0_7 = arith.constant 0 : index
    %c0_8 = arith.constant 0 : index
    %6 = vector.load %arg5[%c0_7, %c0_8] : memref<4x4xf32, #tpu.memory_space<vmem>>, vector<4x4xf32>
    %cst_9 = arith.constant dense<0.000000e+00> : vector<4x256xf32>
    %7 = tpu.matmul %6, %3, %cst_9 {dimension_numbers = #tpu.dot_dimension_numbers<[1], [0], [0], [1], [0, 0, 1, 1], [], []>} : vector<4x4xf32>, vector<4x256xf32>, vector<4x256xf32> -> vector<4x256xf32>
    %8 = arith.addf %5, %7 : vector<4x256xf32>
    %c0_10 = arith.constant 0 : index
    %c0_11 = arith.constant 0 : index
    %9 = vector.load %arg8[%c0_10, %c0_11] : memref<4x1xf32, #tpu.memory_space<vmem>>, vector<4x1xf32>
    %10 = vector.broadcast %9 : vector<4x1xf32> to vector<4x256xf32>
    %11 = arith.addf %8, %10 : vector<4x256xf32>
    %cst_12 = arith.constant 5.000000e-01 : f32
    %12 = vector.broadcast %cst_12 : f32 to vector<4x256xf32>
    %13 = arith.mulf %12, %11 : vector<4x256xf32>
    %14 = math.tanh %13 : vector<4x256xf32>
    %cst_13 = arith.constant 5.000000e-01 : f32
    %15 = vector.broadcast %cst_13 : f32 to vector<4x256xf32>
    %16 = arith.mulf %15, %14 : vector<4x256xf32>
    %cst_14 = arith.constant 5.000000e-01 : f32
    %17 = vector.broadcast %cst_14 : f32 to vector<4x256xf32>
    %18 = arith.addf %16, %17 : vector<4x256xf32>
    %c0_15 = arith.constant 0 : index
    %c0_16 = arith.constant 0 : index
    %19 = vector.load %arg6[%c0_15, %c0_16] : memref<4x4xf32, #tpu.memory_space<vmem>>, vector<4x4xf32>
    %cst_17 = arith.constant dense<0.000000e+00> : vector<4x256xf32>
    %20 = tpu.matmul %19, %1, %cst_17 {dimension_numbers = #tpu.dot_dimension_numbers<[1], [0], [0], [1], [0, 0, 1, 1], [], []>} : vector<4x4xf32>, vector<4x256xf32>, vector<4x256xf32> -> vector<4x256xf32>
    %c0_18 = arith.constant 0 : index
    %c0_19 = arith.constant 0 : index
    %21 = vector.load %arg7[%c0_18, %c0_19] : memref<4x4xf32, #tpu.memory_space<vmem>>, vector<4x4xf32>
    %cst_20 = arith.constant dense<0.000000e+00> : vector<4x256xf32>
    %22 = tpu.matmul %21, %3, %cst_20 {dimension_numbers = #tpu.dot_dimension_numbers<[1], [0], [0], [1], [0, 0, 1, 1], [], []>} : vector<4x4xf32>, vector<4x256xf32>, vector<4x256xf32> -> vector<4x256xf32>
    %23 = arith.addf %20, %22 : vector<4x256xf32>
    %c0_21 = arith.constant 0 : index
    %c0_22 = arith.constant 0 : index
    %24 = vector.load %arg9[%c0_21, %c0_22] : memref<4x1xf32, #tpu.memory_space<vmem>>, vector<4x1xf32>
    %25 = vector.broadcast %24 : vector<4x1xf32> to vector<4x256xf32>
    %26 = arith.addf %23, %25 : vector<4x256xf32>
    %cst_23 = arith.constant 5.000000e-01 : f32
    %27 = vector.broadcast %cst_23 : f32 to vector<4x256xf32>
    %28 = arith.mulf %27, %26 : vector<4x256xf32>
    %29 = math.tanh %28 : vector<4x256xf32>
    %cst_24 = arith.constant 5.000000e-01 : f32
    %30 = vector.broadcast %cst_24 : f32 to vector<4x256xf32>
    %31 = arith.mulf %30, %29 : vector<4x256xf32>
    %cst_25 = arith.constant 5.000000e-01 : f32
    %32 = vector.broadcast %cst_25 : f32 to vector<4x256xf32>
    %33 = arith.addf %31, %32 : vector<4x256xf32>
    %34 = arith.mulf %18, %1 : vector<4x256xf32>
    %35 = arith.mulf %33, %3 : vector<4x256xf32>
    %36 = arith.addf %34, %35 : vector<4x256xf32>
    %c0_26 = arith.constant 0 : index
    %c0_27 = arith.constant 0 : index
    %c0_28 = arith.constant 0 : index
    %37 = vector.load %arg10[%c0_26, %c0_27, %c0_28] : memref<1x4x256xf32, #tpu.memory_space<vmem>>, vector<1x4x256xf32>
    %38 = vector.shape_cast %37 : vector<1x4x256xf32> to vector<4x256xf32>
    %39 = vector.shape_cast %36 : vector<4x256xf32> to vector<1x4x256xf32>
    tpu.vector_store %arg10[%c0_26, %c0_27, %c0_28], %39 {strides = array<i32>} : memref<1x4x256xf32, #tpu.memory_space<vmem>>, vector<1x4x256xf32>,
    return
  }
  func.func @transform_0(%arg0: i32, %arg1: i32) -> (i32, i32, i32) {
    %c0_i32 = arith.constant 0 : i32
    %c0_i32_0 = arith.constant 0 : i32
    return %arg1, %c0_i32, %arg0 : i32, i32, i32
  }
  func.func @transform_1(%arg0: i32, %arg1: i32) -> (i32, i32, i32) {
    %c0_i32 = arith.constant 0 : i32
    %c0_i32_0 = arith.constant 0 : i32
    return %arg1, %c0_i32, %arg0 : i32, i32, i32
  }
  func.func @transform_2(%arg0: i32, %arg1: i32) -> (i32, i32) {
    %c0_i32 = arith.constant 0 : i32
    %c0_i32_0 = arith.constant 0 : i32
    %c0_i32_1 = arith.constant 0 : i32
    return %c0_i32, %c0_i32_0 : i32, i32
  }
  func.func @transform_3(%arg0: i32, %arg1: i32) -> (i32, i32) {
    %c0_i32 = arith.constant 0 : i32
    %c0_i32_0 = arith.constant 0 : i32
    %c0_i32_1 = arith.constant 0 : i32
    return %c0_i32, %c0_i32_0 : i32, i32
  }
  func.func @transform_4(%arg0: i32, %arg1: i32) -> (i32, i32) {
    %c0_i32 = arith.constant 0 : i32
    %c0_i32_0 = arith.constant 0 : i32
    %c0_i32_1 = arith.constant 0 : i32
    return %c0_i32, %c0_i32_0 : i32, i32
  }
  func.func @transform_5(%arg0: i32, %arg1: i32) -> (i32, i32) {
    %c0_i32 = arith.constant 0 : i32
    %c0_i32_0 = arith.constant 0 : i32
    %c0_i32_1 = arith.constant 0 : i32
    return %c0_i32, %c0_i32_0 : i32, i32
  }
  func.func @transform_6(%arg0: i32, %arg1: i32) -> (i32, i32) {
    %c0_i32 = arith.constant 0 : i32
    %c0_i32_0 = arith.constant 0 : i32
    %c0_i32_1 = arith.constant 0 : i32
    return %c0_i32, %c0_i32_0 : i32, i32
  }
  func.func @transform_7(%arg0: i32, %arg1: i32) -> (i32, i32) {
    %c0_i32 = arith.constant 0 : i32
    %c0_i32_0 = arith.constant 0 : i32
    %c0_i32_1 = arith.constant 0 : i32
    return %c0_i32, %c0_i32_0 : i32, i32
  }
  func.func @transform_8(%arg0: i32, %arg1: i32) -> (i32, i32, i32) {
    %c0_i32 = arith.constant 0 : i32
    %c0_i32_0 = arith.constant 0 : i32
    return %arg1, %c0_i32, %arg0 : i32, i32, i32
  }
}

</mosaic_0001>

<llo_original>
// kernel: anatomical_attention_gate_sum.1
$region0: #{anatomical_attention_gate_sum.1}
  #allocation0 [shape = 'u32[]', space=smem, size = 0x4, offset = 0x4, fixed_abs, tag = 'smem constant byte address 0x4 - core index']
  #allocation1 [shape = 'u32[72,128]{1,0:T(1,128)}', space=vmem, size = 0x9000, scoped, tag = 'internal scratch']
  %s0 = inlined_call_operand.vmem [shape: f32[2,4,256], index: 0, kind: input, shape index: {}]
  %s1 = inlined_call_operand.vmem [shape: f32[2,4,256], index: 1, kind: input, shape index: {}]
  %s2 = inlined_call_operand.vmem [shape: f32[4,4], index: 2, kind: input, shape index: {}]
  %s3 = inlined_call_operand.vmem [shape: f32[4,4], index: 3, kind: input, shape index: {}]
  %s4 = inlined_call_operand.vmem [shape: f32[4,4], index: 4, kind: input, shape index: {}]
  %s5 = inlined_call_operand.vmem [shape: f32[4,4], index: 5, kind: input, shape index: {}]
  %s6 = inlined_call_operand.vmem [shape: f32[4,1], index: 6, kind: input, shape index: {}]
  %s7 = inlined_call_operand.vmem [shape: f32[4,1], index: 7, kind: input, shape index: {}]
  %s8 = inlined_call_operand.vmem [shape: f32[2,4,256], index: 8, kind: output, shape index: {}]
  %s9 = sld [smem:[#allocation0]]
  $region65: #{anatomical_attention_gate_sum.1} parent=0
    _
  %s11 = ssub.s32 1, %s9
  %s12 = scalar_select 0, %s11, %s9
  loop: start=0, step=1, limit=4
  $region2: #{anatomical_attention_gate_sum.1} parent=0 // loop_pre_header
    _
  $region3: #{anatomical_attention_gate_sum.1} parent=0 // loop_header
    %s14 = sphi 0, %s18
    %p15 = scmp.ge.s32.totalorder %s14, 4
    %s21 = sphi 0, %s33
    %s22 = sphi 0, %s29
    %s23 = sphi 0, %s21
    %s24 = sphi 0, %s22
    %s25 = sphi 0, %s23
    %s26 = sphi 0, %s24
    %s38 = sphi 0, %s40
    %s41 = sphi 0, %s38
    %s42 = sphi 0, %s41
    %s58 = sphi 0, %s42
    %s66 = sphi 0, %s68
    %s69 = sphi 0, %s66
    %s70 = sphi 0, %s69
    %s86 = sphi 0, %s70
    %s90 = sphi 0, %s90
    %s92 = sphi 0, %s90
    %s93 = sphi 0, %s92
    %s107 = sphi 0, %s93
    %s111 = sphi 0, %s111
    %s113 = sphi 0, %s111
    %s114 = sphi 0, %s113
    %s128 = sphi 0, %s114
    %s132 = sphi 0, %s132
    %s134 = sphi 0, %s132
    %s135 = sphi 0, %s134
    %s149 = sphi 0, %s135
    %s153 = sphi 0, %s153
    %s155 = sphi 0, %s153
    %s156 = sphi 0, %s155
    %s170 = sphi 0, %s156
    %s174 = sphi 0, %s174
    %s176 = sphi 0, %s174
    %s177 = sphi 0, %s176
    %s191 = sphi 0, %s177
    %s195 = sphi 0, %s195
    %s197 = sphi 0, %s195
    %s198 = sphi 0, %s197
    %s212 = sphi 0, %s198
    %s220 = sphi 0, %s222
    %s223 = sphi 0, %s220
    %s224 = sphi 0, %s223
    %s240 = sphi 0, %s224
  $region4: #{anatomical_attention_gate_sum.1} parent=0 // loop_header_branch
    %17 = sbr.rel (%p15) target = $region8
  $region5: #{anatomical_attention_gate_sum.1} parent=0 // loop_body
    %s19 = ssub.s32 %s14, 1
    %s20 = ssub.s32 %s14, 2
    %s27 = sadd.s32 1, %s22
    %p28 = scmp.ge.s32.totalorder %s27, 2
    %s29 = scalar_select %p28, 0, %s27
    %s30 = sadd.s32 1, %s21
    %s31 = scalar_select %p28, %s30, %s21
    %p32 = scmp.ge.s32.totalorder %s31, 1
    %s33 = scalar_select %p32, 0, %s31
    %s34 = ssub.s32 %s22, %s29
    %s35 = ssub.s32 %s21, %s33
    %s36 = sor.u32 %s34, %s35
    %p37 = scmp.eq.s32.totalorder %s36, 0
    %s39 = sadd.s32 %s38, 1
    %s40 = scalar_select %p37, %s38, %s39
    %p43 = pneg %p37
    %p44 = scmp.eq.s32.totalorder %s14, 1
    %p45 = por %p43, %p44
    %p46 = scmp.ne.s32.totalorder %s38, %s41
    %p47 = scmp.eq.s32.totalorder %s14, 0
    %p48 = por %p46, %p47
    %p49 = scmp.ne.s32.totalorder %s38, %s41
    %p50 = scmp.eq.s32.totalorder %s19, 1
    %p51 = por %p49, %p50
    %p52 = scmp.ne.s32.totalorder %s41, %s42
    %p53 = scmp.eq.s32.totalorder %s19, 0
    %p54 = por %p52, %p53
    %p55 = scmp.ne.s32.totalorder %s41, %s42
    %p56 = scmp.eq.s32.totalorder %s20, 1
    %p57 = por %p55, %p56
    %p59 = scmp.ne.s32.totalorder %s42, %s58
    %p60 = scmp.eq.s32.totalorder %s20, 0
    %p61 = por %p59, %p60
    %s62 = ssub.s32 %s22, %s29
    %s63 = ssub.s32 %s21, %s33
    %s64 = sor.u32 %s62, %s63
    %p65 = scmp.eq.s32.totalorder %s64, 0
    %s67 = sadd.s32 %s66, 1
    %s68 = scalar_select %p65, %s66, %s67
    %p71 = pneg %p65
    %p72 = scmp.eq.s32.totalorder %s14, 1
    %p73 = por %p71, %p72
    %p74 = scmp.ne.s32.totalorder %s66, %s69
    %p75 = scmp.eq.s32.totalorder %s14, 0
    %p76 = por %p74, %p75
    %p77 = scmp.ne.s32.totalorder %s66, %s69
    %p78 = scmp.eq.s32.totalorder %s19, 1
    %p79 = por %p77, %p78
    %p80 = scmp.ne.s32.totalorder %s69, %s70
    %p81 = scmp.eq.s32.totalorder %s19, 0
    %p82 = por %p80, %p81
    %p83 = scmp.ne.s32.totalorder %s69, %s70
    %p84 = scmp.eq.s32.totalorder %s20, 1
    %p85 = por %p83, %p84
    %p87 = scmp.ne.s32.totalorder %s70, %s86
    %p88 = scmp.eq.s32.totalorder %s20, 0
    %p89 = por %p87, %p88
    %s91 = sadd.s32 %s90, 1
    %p94 = scmp.eq.s32.totalorder %s14, 1
    %p95 = scmp.ne.s32.totalorder %s90, %s92
    %p96 = scmp.eq.s32.totalorder %s14, 0
    %p97 = por %p95, %p96
    %p98 = scmp.ne.s32.totalorder %s90, %s92
    %p99 = scmp.eq.s32.totalorder %s19, 1
    %p100 = por %p98, %p99
    %p101 = scmp.ne.s32.totalorder %s92, %s93
    %p102 = scmp.eq.s32.totalorder %s19, 0
    %p103 = por %p101, %p102
    %p104 = scmp.ne.s32.totalorder %s92, %s93
    %p105 = scmp.eq.s32.totalorder %s20, 1
    %p106 = por %p104, %p105
    %p108 = scmp.ne.s32.totalorder %s93, %s107
    %p109 = scmp.eq.s32.totalorder %s20, 0
    %p110 = por %p108, %p109
    %s112 = sadd.s32 %s111, 1
    %p115 = scmp.eq.s32.totalorder %s14, 1
    %p116 = scmp.ne.s32.totalorder %s111, %s113
    %p117 = scmp.eq.s32.totalorder %s14, 0
    %p118 = por %p116, %p117
    %p119 = scmp.ne.s32.totalorder %s111, %s113
    %p120 = scmp.eq.s32.totalorder %s19, 1
    %p121 = por %p119, %p120
    %p122 = scmp.ne.s32.totalorder %s113, %s114
    %p123 = scmp.eq.s32.totalorder %s19, 0
    %p124 = por %p122, %p123
    %p125 = scmp.ne.s32.totalorder %s113, %s114
    %p126 = scmp.eq.s32.totalorder %s20, 1
    %p127 = por %p125, %p126
    %p129 = scmp.ne.s32.totalorder %s114, %s128
    %p130 = scmp.eq.s32.totalorder %s20, 0
    %p131 = por %p129, %p130
    %s133 = sadd.s32 %s132, 1
    %p136 = scmp.eq.s32.totalorder %s14, 1
    %p137 = scmp.ne.s32.totalorder %s132, %s134
    %p138 = scmp.eq.s32.totalorder %s14, 0
    %p139 = por %p137, %p138
    %p140 = scmp.ne.s32.totalorder %s132, %s134
    %p141 = scmp.eq.s32.totalorder %s19, 1
    %p142 = por %p140, %p141
    %p143 = scmp.ne.s32.totalorder %s134, %s135
    %p144 = scmp.eq.s32.totalorder %s19, 0
    %p145 = por %p143, %p144
    %p146 = scmp.ne.s32.totalorder %s134, %s135
    %p147 = scmp.eq.s32.totalorder %s20, 1
    %p148 = por %p146, %p147
    %p150 = scmp.ne.s32.totalorder %s135, %s149
    %p151 = scmp.eq.s32.totalorder %s20, 0
    %p152 = por %p150, %p151
    %s154 = sadd.s32 %s153, 1
    %p157 = scmp.eq.s32.totalorder %s14, 1
    %p158 = scmp.ne.s32.totalorder %s153, %s155
    %p159 = scmp.eq.s32.totalorder %s14, 0
    %p160 = por %p158, %p159
    %p161 = scmp.ne.s32.totalorder %s153, %s155
    %p162 = scmp.eq.s32.totalorder %s19, 1
    %p163 = por %p161, %p162
    %p164 = scmp.ne.s32.totalorder %s155, %s156
    %p165 = scmp.eq.s32.totalorder %s19, 0
    %p166 = por %p164, %p165
    %p167 = scmp.ne.s32.totalorder %s155, %s156
    %p168 = scmp.eq.s32.totalorder %s20, 1
    %p169 = por %p167, %p168
    %p171 = scmp.ne.s32.totalorder %s156, %s170
    %p172 = scmp.eq.s32.totalorder %s20, 0
    %p173 = por %p171, %p172
    %s175 = sadd.s32 %s174, 1
    %p178 = scmp.eq.s32.totalorder %s14, 1
    %p179 = scmp.ne.s32.totalorder %s174, %s176
    %p180 = scmp.eq.s32.totalorder %s14, 0
    %p181 = por %p179, %p180
    %p182 = scmp.ne.s32.totalorder %s174, %s176
    %p183 = scmp.eq.s32.totalorder %s19, 1
    %p184 = por %p182, %p183
    %p185 = scmp.ne.s32.totalorder %s176, %s177
    %p186 = scmp.eq.s32.totalorder %s19, 0
    %p187 = por %p185, %p186
    %p188 = scmp.ne.s32.totalorder %s176, %s177
    %p189 = scmp.eq.s32.totalorder %s20, 1
    %p190 = por %p188, %p189
    %p192 = scmp.ne.s32.totalorder %s177, %s191
    %p193 = scmp.eq.s32.totalorder %s20, 0
    %p194 = por %p192, %p193
    %s196 = sadd.s32 %s195, 1
    %p199 = scmp.eq.s32.totalorder %s14, 1
    %p200 = scmp.ne.s32.totalorder %s195, %s197
    %p201 = scmp.eq.s32.totalorder %s14, 0
    %p202 = por %p200, %p201
    %p203 = scmp.ne.s32.totalorder %s195, %s197
    %p204 = scmp.eq.s32.totalorder %s19, 1
    %p205 = por %p203, %p204
    %p206 = scmp.ne.s32.totalorder %s197, %s198
    %p207 = scmp.eq.s32.totalorder %s19, 0
    %p208 = por %p206, %p207
    %p209 = scmp.ne.s32.totalorder %s197, %s198
    %p210 = scmp.eq.s32.totalorder %s20, 1
    %p211 = por %p209, %p210
    %p213 = scmp.ne.s32.totalorder %s198, %s212
    %p214 = scmp.eq.s32.totalorder %s20, 0
    %p215 = por %p213, %p214
    %s216 = ssub.s32 %s22, %s29
    %s217 = ssub.s32 %s21, %s33
    %s218 = sor.u32 %s216, %s217
    %p219 = scmp.eq.s32.totalorder %s218, 0
    %s221 = sadd.s32 %s220, 1
    %s222 = scalar_select %p219, %s220, %s221
    %p225 = pneg %p219
    %p226 = scmp.eq.s32.totalorder %s14, 1
    %p227 = por %p225, %p226
    %p228 = scmp.ne.s32.totalorder %s220, %s223
    %p229 = scmp.eq.s32.totalorder %s14, 0
    %p230 = por %p228, %p229
    %p231 = scmp.ne.s32.totalorder %s220, %s223
    %p232 = scmp.eq.s32.totalorder %s19, 1
    %p233 = por %p231, %p232
    %p234 = scmp.ne.s32.totalorder %s223, %s224
    %p235 = scmp.eq.s32.totalorder %s19, 0
    %p236 = por %p234, %p235
    %p237 = scmp.ne.s32.totalorder %s223, %s224
    %p238 = scmp.eq.s32.totalorder %s20, 1
    %p239 = por %p237, %p238
    %p241 = scmp.ne.s32.totalorder %s224, %s240
    %p242 = scmp.eq.s32.totalorder %s20, 0
    %p243 = por %p241, %p242
    %p244 = scmp.le.s32.totalorder 1, %s14
    %p245 = scmp.lt.s32.totalorder %s14, 3
    %p246 = pnand %p244, %p245
    %p247 = pneg %p246
    // Predicated region
    $region9: #{anatomical_attention_gate_sum.1} parent=5 // pred_check
      _
    $region10: #{anatomical_attention_gate_sum.1} parent=5 // pred_check_branch
      %249 = sbr.rel (%p246) target = $region12
    $region11: #{anatomical_attention_gate_sum.1} parent=5 // pred_region
      %s250 = ssub.s32 %s14, 1
      // Predicated region
      $region13: #{anatomical_attention_gate_sum.1} parent=11 // pred_check
        %p251 = pneg %p103
      $region14: #{anatomical_attention_gate_sum.1} parent=11 // pred_check_branch
        %253 = sbr.rel (%p251) target = $region16
      $region15: #{anatomical_attention_gate_sum.1} parent=11 // pred_region
        _
      $region16: #{anatomical_attention_gate_sum.1} parent=11 // pred_fallthru
        _
      // Predicated region
      $region17: #{anatomical_attention_gate_sum.1} parent=11 // pred_check
        %p254 = pneg %p124
      $region18: #{anatomical_attention_gate_sum.1} parent=11 // pred_check_branch
        %256 = sbr.rel (%p254) target = $region20
      $region19: #{anatomical_attention_gate_sum.1} parent=11 // pred_region
        _
      $region20: #{anatomical_attention_gate_sum.1} parent=11 // pred_fallthru
        _
      // Predicated region
      $region21: #{anatomical_attention_gate_sum.1} parent=11 // pred_check
        %p257 = pneg %p145
      $region22: #{anatomical_attention_gate_sum.1} parent=11 // pred_check_branch
        %259 = sbr.rel (%p257) target = $region24
      $region23: #{anatomical_attention_gate_sum.1} parent=11 // pred_region
        _
      $region24: #{anatomical_attention_gate_sum.1} parent=11 // pred_fallthru
        _
      // Predicated region
      $region25: #{anatomical_attention_gate_sum.1} parent=11 // pred_check
        %p260 = pneg %p166
      $region26: #{anatomical_attention_gate_sum.1} parent=11 // pred_check_branch
        %262 = sbr.rel (%p260) target = $region28
      $region27: #{anatomical_attention_gate_sum.1} parent=11 // pred_region
        _
      $region28: #{anatomical_attention_gate_sum.1} parent=11 // pred_fallthru
        _
      // Predicated region
      $region29: #{anatomical_attention_gate_sum.1} parent=11 // pred_check
        %p263 = pneg %p187
      $region30: #{anatomical_attention_gate_sum.1} parent=11 // pred_check_branch
        %265 = sbr.rel (%p263) target = $region32
      $region31: #{anatomical_attention_gate_sum.1} parent=11 // pred_region
        _
      $region32: #{anatomical_attention_gate_sum.1} parent=11 // pred_fallthru
        _
      // Predicated region
      $region33: #{anatomical_attention_gate_sum.1} parent=11 // pred_check
        %p266 = pneg %p208
      $region34: #{anatomical_attention_gate_sum.1} parent=11 // pred_check_branch
        %268 = sbr.rel (%p266) target = $region36
      $region35: #{anatomical_attention_gate_sum.1} parent=11 // pred_region
        _
      $region36: #{anatomical_attention_gate_sum.1} parent=11 // pred_fallthru
        _
    $region12: #{anatomical_attention_gate_sum.1} parent=5 // pred_fallthru
      _
    %p269 = scmp.lt.s32.totalorder %s14, 2
    // Predicated region
    $region37: #{anatomical_attention_gate_sum.1} parent=5 // pred_check
      %p270 = pneg %p269
    $region38: #{anatomical_attention_gate_sum.1} parent=5 // pred_check_branch
      %272 = sbr.rel (%p270) target = $region40
    $region39: #{anatomical_attention_gate_sum.1} parent=5 // pred_region
      // Predicated region
      $region41: #{anatomical_attention_gate_sum.1} parent=39 // pred_check
        %p273 = pneg %p48
      $region42: #{anatomical_attention_gate_sum.1} parent=39 // pred_check_branch
        %275 = sbr.rel (%p273) target = $region44
      $region43: #{anatomical_attention_gate_sum.1} parent=39 // pred_region
        %s276 = smul.u32 2, %s21
        %p277 = scmp.lt.s32.totalorder %s22, 1
        %s278 = scalar_select %p277, %s22, 1
        %p279 = scmp.lt.s32.totalorder %s276, 1
        %s280 = scalar_select %p279, %s276, 1
        %s281 = smul.addr %s278, 2
        %s282 = sadd.s32 %s280, %s281
        %s283 = smul.addr %s282, 4
        %s284 = scalar_lea.vmem %s0, %s283
        %s285 = smul.u32 2, %s21
      $region44: #{anatomical_attention_gate_sum.1} parent=39 // pred_fallthru
        _
      // Predicated region
      $region45: #{anatomical_attention_gate_sum.1} parent=39 // pred_check
        %p286 = pneg %p76
      $region46: #{anatomical_attention_gate_sum.1} parent=39 // pred_check_branch
        %288 = sbr.rel (%p286) target = $region48
      $region47: #{anatomical_attention_gate_sum.1} parent=39 // pred_region
        %s289 = smul.u32 2, %s21
        %p290 = scmp.lt.s32.totalorder %s22, 1
        %s291 = scalar_select %p290, %s22, 1
        %p292 = scmp.lt.s32.totalorder %s289, 1
        %s293 = scalar_select %p292, %s289, 1
        %s294 = smul.addr %s291, 2
        %s295 = sadd.s32 %s293, %s294
        %s296 = smul.addr %s295, 4
        %s297 = scalar_lea.vmem %s1, %s296
        %s298 = smul.u32 2, %s21
      $region48: #{anatomical_attention_gate_sum.1} parent=39 // pred_fallthru
        _
    $region40: #{anatomical_attention_gate_sum.1} parent=5 // pred_fallthru
      _
    %p299 = scmp.le.s32.totalorder 1, %s14
    %p300 = scmp.lt.s32.totalorder %s14, 3
    %p301 = pnand %p299, %p300
    %p302 = pneg %p301
    // Predicated region
    $region49: #{anatomical_attention_gate_sum.1} parent=5 // pred_check
      _
    $region50: #{anatomical_attention_gate_sum.1} parent=5 // pred_check_branch
      %304 = sbr.rel (%p301) target = $region52
    $region51: #{anatomical_attention_gate_sum.1} parent=5 // pred_region
      %s305 = ssub.s32 %s14, 1
      %s306 = smul.u32 2, %s23
      %p307 = scmp.lt.s32.totalorder %s24, 1
      %s308 = scalar_select %p307, %s24, 1
      %p309 = scmp.lt.s32.totalorder %s306, 1
      %s310 = scalar_select %p309, %s306, 1
      %s311 = smul.addr %s308, 2
      %s312 = sadd.s32 %s310, %s311
      %s313 = smul.addr %s312, 4
      %s314 = scalar_lea.vmem %s0, %s313
      %p315 = pneg %p54
      %p316 = pneg %p51
      %s317 = smul.u32 2, %s23
      %p318 = scmp.lt.s32.totalorder %s24, 1
      %s319 = scalar_select %p318, %s24, 1
      %p320 = scmp.lt.s32.totalorder %s317, 1
      %s321 = scalar_select %p320, %s317, 1
      %s322 = smul.addr %s319, 2
      %s323 = sadd.s32 %s321, %s322
      %s324 = smul.addr %s323, 4
      %s325 = scalar_lea.vmem %s1, %s324
      %p326 = pneg %p82
      %p327 = pneg %p79
      %p328 = pneg %p103
      %p329 = pneg %p100
      %p330 = pneg %p124
      %p331 = pneg %p121
      %p332 = pneg %p145
      %p333 = pneg %p142
      %p334 = pneg %p166
      %p335 = pneg %p163
      %p336 = pneg %p187
      %p337 = pneg %p184
      %p338 = pneg %p208
      %p339 = pneg %p205
      %p340 = pneg %p236
      %p341 = pneg %p233
      %s342 = smul.u32 2, %s23
      %p343 = scmp.lt.s32.totalorder %s24, 1
      %s344 = scalar_select %p343, %s24, 1
      %p345 = scmp.lt.s32.totalorder %s342, 1
      %s346 = scalar_select %p345, %s342, 1
      %s347 = smul.addr %s344, 2
      %s348 = sadd.s32 %s346, %s347
      %s349 = smul.addr %s348, 4
      %s350 = scalar_lea.vmem %s8, %s349
      %s351 = smul.u32 2, %s23
      %p352 = scmp.lt.s32.totalorder %s24, 1
      %s353 = scalar_select %p352, %s24, 1
      %p354 = scmp.lt.s32.totalorder %s351, 1
      %s355 = scalar_select %p354, %s351, 1
      %s356 = smul.addr %s353, 2
      %s357 = sadd.s32 %s355, %s356
      %s358 = smul.addr %s357, 4
      %s359 = scalar_lea.vmem %s0, %s358
      %s360 = smul.u32 2, %s23
      %s361 = smul.u32 2, %s23
      %p362 = scmp.lt.s32.totalorder %s24, 1
      %s363 = scalar_select %p362, %s24, 1
      %p364 = scmp.lt.s32.totalorder %s361, 1
      %s365 = scalar_select %p364, %s361, 1
      %s366 = smul.addr %s363, 2
      %s367 = sadd.s32 %s365, %s366
      %s368 = smul.addr %s367, 4
      %s369 = scalar_lea.vmem %s1, %s368
      %s370 = smul.u32 2, %s23
      %s371 = smul.u32 2, %s23
      %p372 = scmp.lt.s32.totalorder %s24, 1
      %s373 = scalar_select %p372, %s24, 1
      %p374 = scmp.lt.s32.totalorder %s371, 1
      %s375 = scalar_select %p374, %s371, 1
      %s376 = smul.addr %s373, 2
      %s377 = sadd.s32 %s375, %s376
      %s378 = smul.addr %s377, 4
      %s379 = scalar_lea.vmem %s8, %s378
      %s380 = smul.u32 2, %s23
      %v381 = vld [vmem:[%s359] sm:$0xff]
      %v382 = vld [vmem:[%s369] sm:$0xff]
      %v383 = vld [vmem:[%s2] sm:$0xf]
      %v384 = vld [vmem:[%s3] sm:$0xf]
      %386 = vst [vmem:[#allocation1] ss:$2 sm:$0xff] %v382
      %v387 = vld.sshfl [vmem:[#allocation1] sm:$0xff pattern:$0x75316420]
      %v388 = vld.sshfl [vmem:[#allocation1 + $0x8] sm:$0xff pattern:$0x75316420]
      %vm389 = vcmask 31744
      %v391 = vsel %vm389, %v384, 0
      %vm393 = vcmask 1043456
      %v394 = vsel %vm393, %v387, 0
      %v396 = vsel %vm393, %v388, 0
      %398 = vmatpush.msra.mxu0 0.0
      %399 = vmatpush.msra.mxu0 0.0
      %400 = vmatpush.msra.mxu0 0.0
      %401 = vmatpush.msra.mxu0 0.0
      %402 = vmatpush.msra.mxu0 0.0
      %403 = vmatpush.msra.mxu0 0.0
      %404 = vmatpush.msra.mxu0 0.0
      %405 = vmatpush.msra.mxu0 0.0
      %406 = vmatpush.msra.mxu0 0.0
      %407 = vmatpush.msra.mxu0 0.0
      %408 = vmatpush.msra.mxu0 0.0
      %409 = vmatpush.msra.mxu0 0.0
      %410 = vmatpush.msra.mxu0 0.0
      %411 = vmatpush.msra.mxu0 0.0
      %412 = vmatpush.msra.mxu0 0.0
      %413 = vmatpush.msra.mxu0 %v394
      %414 = vmatmul.f32.gmra.mxu0 %v391
      %v415 = vpop.f32.mrf.mxu0
      %v416 = vadd.f32 0.0, %v415
      %417 = vdwg.mxu0
      %418 = vmatpush.msra.mxu0 0.0
      %419 = vmatpush.msra.mxu0 0.0
      %420 = vmatpush.msra.mxu0 0.0
      %421 = vmatpush.msra.mxu0 0.0
      %422 = vmatpush.msra.mxu0 0.0
      %423 = vmatpush.msra.mxu0 0.0
      %424 = vmatpush.msra.mxu0 0.0
      %425 = vmatpush.msra.mxu0 0.0
      %426 = vmatpush.msra.mxu0 0.0
      %427 = vmatpush.msra.mxu0 0.0
      %428 = vmatpush.msra.mxu0 0.0
      %429 = vmatpush.msra.mxu0 0.0
      %430 = vmatpush.msra.mxu0 0.0
      %431 = vmatpush.msra.mxu0 0.0
      %432 = vmatpush.msra.mxu0 0.0
      %433 = vmatpush.msra.mxu0 %v396
      %434 = vmatmul.f32.gmra.mxu0 %v391
      %v435 = vpop.f32.mrf.mxu0
      %v436 = vadd.f32 0.0, %v435
      %437 = vdwg.mxu0
      %439 = vst [vmem:[#allocation1] ss:$2 sm:$0xff] %v381
      %v440 = vld.sshfl [vmem:[#allocation1] sm:$0xff pattern:$0x75316420]
      %v441 = vld.sshfl [vmem:[#allocation1 + $0x8] sm:$0xff pattern:$0x75316420]
      %v443 = vsel %vm389, %v383, 0
      %v445 = vsel %vm393, %v440, 0
      %v447 = vsel %vm393, %v441, 0
      %449 = vmatpush.msra.mxu0 0.0
      %450 = vmatpush.msra.mxu0 0.0
      %451 = vmatpush.msra.mxu0 0.0
      %452 = vmatpush.msra.mxu0 0.0
      %453 = vmatpush.msra.mxu0 0.0
      %454 = vmatpush.msra.mxu0 0.0
      %455 = vmatpush.msra.mxu0 0.0
      %456 = vmatpush.msra.mxu0 0.0
      %457 = vmatpush.msra.mxu0 0.0
      %458 = vmatpush.msra.mxu0 0.0
      %459 = vmatpush.msra.mxu0 0.0
      %460 = vmatpush.msra.mxu0 0.0
      %461 = vmatpush.msra.mxu0 0.0
      %462 = vmatpush.msra.mxu0 0.0
      %463 = vmatpush.msra.mxu0 0.0
      %464 = vmatpush.msra.mxu0 %v445
      %465 = vmatmul.f32.gmra.mxu0 %v443
      %v466 = vpop.f32.mrf.mxu0
      %v467 = vadd.f32 %v416, %v466
      %468 = vdwg.mxu0
      %469 = vmatpush.msra.mxu0 0.0
      %470 = vmatpush.msra.mxu0 0.0
      %471 = vmatpush.msra.mxu0 0.0
      %472 = vmatpush.msra.mxu0 0.0
      %473 = vmatpush.msra.mxu0 0.0
      %474 = vmatpush.msra.mxu0 0.0
      %475 = vmatpush.msra.mxu0 0.0
      %476 = vmatpush.msra.mxu0 0.0
      %477 = vmatpush.msra.mxu0 0.0
      %478 = vmatpush.msra.mxu0 0.0
      %479 = vmatpush.msra.mxu0 0.0
      %480 = vmatpush.msra.mxu0 0.0
      %481 = vmatpush.msra.mxu0 0.0
      %482 = vmatpush.msra.mxu0 0.0
      %483 = vmatpush.msra.mxu0 0.0
      %484 = vmatpush.msra.mxu0 %v447
      %485 = vmatmul.f32.gmra.mxu0 %v443
      %v486 = vpop.f32.mrf.mxu0
      %v487 = vadd.f32 %v436, %v486
      %488 = vdwg.mxu0
      %v489 = vld [vmem:[%s6] sm:$0xf]
      %491 = vset.pattern.permute.xlu0 0
      %492 = vperm.xlu0 %491, %v489
      %v493 = vpop.permute.xlu0 %492
      %v495 = vadd.f32 %v467, %v493
      %v496 = vadd.f32 %v487, %v493
      %v497 = vmul.f32 %v495, 0.5
      %v498 = vmul.f32 %v496, 0.5
      %v499 = vtanh.pop %v497
      %v500 = vtanh.pop %v498
      %v501 = vmul.f32 %v499, 0.5
      %v502 = vmul.f32 %v500, 0.5
      %v503 = vadd.f32 %v501, 0.5
      %v504 = vadd.f32 %v502, 0.5
      %v505 = vld [vmem:[%s4] sm:$0xf]
      %v506 = vld [vmem:[%s5] sm:$0xf]
      %507 = vst [vmem:[#allocation1] ss:$2 sm:$0xff] %v382
      %v508 = vld.sshfl [vmem:[#allocation1] sm:$0xff pattern:$0x75316420]
      %v509 = vld.sshfl [vmem:[#allocation1 + $0x8] sm:$0xff pattern:$0x75316420]
      %v511 = vsel %vm389, %v506, 0
      %v513 = vsel %vm393, %v508, 0
      %v515 = vsel %vm393, %v509, 0
      %517 = vmatpush.msra.mxu0 0.0
      %518 = vmatpush.msra.mxu0 0.0
      %519 = vmatpush.msra.mxu0 0.0
      %520 = vmatpush.msra.mxu0 0.0
      %521 = vmatpush.msra.mxu0 0.0
      %522 = vmatpush.msra.mxu0 0.0
      %523 = vmatpush.msra.mxu0 0.0
      %524 = vmatpush.msra.mxu0 0.0
      %525 = vmatpush.msra.mxu0 0.0
      %526 = vmatpush.msra.mxu0 0.0
      %527 = vmatpush.msra.mxu0 0.0
      %528 = vmatpush.msra.mxu0 0.0
      %529 = vmatpush.msra.mxu0 0.0
      %530 = vmatpush.msra.mxu0 0.0
      %531 = vmatpush.msra.mxu0 0.0
      %532 = vmatpush.msra.mxu0 %v513
      %533 = vmatmul.f32.gmra.mxu0 %v511
      %v534 = vpop.f32.mrf.mxu0
      %v535 = vadd.f32 0.0, %v534
      %536 = vdwg.mxu0
      %537 = vmatpush.msra.mxu0 0.0
      %538 = vmatpush.msra.mxu0 0.0
      %539 = vmatpush.msra.mxu0 0.0
      %540 = vmatpush.msra.mxu0 0.0
      %541 = vmatpush.msra.mxu0 0.0
      %542 = vmatpush.msra.mxu0 0.0
      %543 = vmatpush.msra.mxu0 0.0
      %544 = vmatpush.msra.mxu0 0.0
      %545 = vmatpush.msra.mxu0 0.0
      %546 = vmatpush.msra.mxu0 0.0
      %547 = vmatpush.msra.mxu0 0.0
      %548 = vmatpush.msra.mxu0 0.0
      %549 = vmatpush.msra.mxu0 0.0
      %550 = vmatpush.msra.mxu0 0.0
      %551 = vmatpush.msra.mxu0 0.0
      %552 = vmatpush.msra.mxu0 %v515
      %553 = vmatmul.f32.gmra.mxu0 %v511
      %v554 = vpop.f32.mrf.mxu0
      %v555 = vadd.f32 0.0, %v554
      %556 = vdwg.mxu0
      %557 = vst [vmem:[#allocation1] ss:$2 sm:$0xff] %v381
      %v558 = vld.sshfl [vmem:[#allocation1] sm:$0xff pattern:$0x75316420]
      %v559 = vld.sshfl [vmem:[#allocation1 + $0x8] sm:$0xff pattern:$0x75316420]
      %v561 = vsel %vm389, %v505, 0
      %v563 = vsel %vm393, %v558, 0
      %v565 = vsel %vm393, %v559, 0
      %567 = vmatpush.msra.mxu0 0.0
      %568 = vmatpush.msra.mxu0 0.0
      %569 = vmatpush.msra.mxu0 0.0
      %570 = vmatpush.msra.mxu0 0.0
      %571 = vmatpush.msra.mxu0 0.0
      %572 = vmatpush.msra.mxu0 0.0
      %573 = vmatpush.msra.mxu0 0.0
      %574 = vmatpush.msra.mxu0 0.0
      %575 = vmatpush.msra.mxu0 0.0
      %576 = vmatpush.msra.mxu0 0.0
      %577 = vmatpush.msra.mxu0 0.0
      %578 = vmatpush.msra.mxu0 0.0
      %579 = vmatpush.msra.mxu0 0.0
      %580 = vmatpush.msra.mxu0 0.0
      %581 = vmatpush.msra.mxu0 0.0
      %582 = vmatpush.msra.mxu0 %v563
      %583 = vmatmul.f32.gmra.mxu0 %v561
      %v584 = vpop.f32.mrf.mxu0
      %v585 = vadd.f32 %v535, %v584
      %586 = vdwg.mxu0
      %587 = vmatpush.msra.mxu0 0.0
      %588 = vmatpush.msra.mxu0 0.0
      %589 = vmatpush.msra.mxu0 0.0
      %590 = vmatpush.msra.mxu0 0.0
      %591 = vmatpush.msra.mxu0 0.0
      %592 = vmatpush.msra.mxu0 0.0
      %593 = vmatpush.msra.mxu0 0.0
      %594 = vmatpush.msra.mxu0 0.0
      %595 = vmatpush.msra.mxu0 0.0
      %596 = vmatpush.msra.mxu0 0.0
      %597 = vmatpush.msra.mxu0 0.0
      %598 = vmatpush.msra.mxu0 0.0
      %599 = vmatpush.msra.mxu0 0.0
      %600 = vmatpush.msra.mxu0 0.0
      %601 = vmatpush.msra.mxu0 0.0
      %602 = vmatpush.msra.mxu0 %v565
      %603 = vmatmul.f32.gmra.mxu0 %v561
      %v604 = vpop.f32.mrf.mxu0
      %v605 = vadd.f32 %v555, %v604
      %606 = vdwg.mxu0
      %v607 = vld [vmem:[%s7] sm:$0xf]
      %609 = vset.pattern.permute.xlu0 0
      %610 = vperm.xlu0 %609, %v607
      %v611 = vpop.permute.xlu0 %610
      %v613 = vadd.f32 %v585, %v611
      %v614 = vadd.f32 %v605, %v611
      %v615 = vmul.f32 %v613, 0.5
      %v616 = vmul.f32 %v614, 0.5
      %v617 = vtanh.pop %v615
      %v618 = vtanh.pop %v616
      %v619 = vmul.f32 %v617, 0.5
      %v620 = vmul.f32 %v618, 0.5
      %v621 = vadd.f32 %v619, 0.5
      %v622 = vadd.f32 %v620, 0.5
      %623 = vst [vmem:[#allocation1] ss:$2 sm:$0xff] %v381
      %v624 = vld.sshfl [vmem:[#allocation1] sm:$0xff pattern:$0x75316420]
      %v625 = vld.sshfl [vmem:[#allocation1 + $0x8] sm:$0xff pattern:$0x75316420]
      %v628 = vmul.f32 %v503, %v624
      %v629 = vmul.f32 %v504, %v625
      %630 = vst [vmem:[#allocation1] ss:$2 sm:$0xff] %v382
      %v631 = vld.sshfl [vmem:[#allocation1] sm:$0xff pattern:$0x75316420]
      %v632 = vld.sshfl [vmem:[#allocation1 + $0x8] sm:$0xff pattern:$0x75316420]
      %v635 = vmul.f32 %v621, %v631
      %v636 = vmul.f32 %v622, %v632
      %v637 = vadd.f32 %v628, %v635
      %v638 = vadd.f32 %v629, %v636
      %v641 = vrot.slane %v638, 4
      %v642 = vsel %vm393, %v637, %v641
      %644 = vst [vmem:[%s379] sm:$0xff] %v642
      %s645 = smul.u32 2, %s23
      %p646 = scmp.lt.s32.totalorder %s24, 1
      %s647 = scalar_select %p646, %s24, 1
      %p648 = scmp.lt.s32.totalorder %s645, 1
      %s649 = scalar_select %p648, %s645, 1
      %s650 = smul.addr %s647, 2
      %s651 = sadd.s32 %s649, %s650
      %s652 = smul.addr %s651, 4
      %s653 = scalar_lea.vmem %s8, %s652
      // Predicated region
      $region53: #{anatomical_attention_gate_sum.1} parent=51 // pred_check
        %p654 = pneg %p233
      $region54: #{anatomical_attention_gate_sum.1} parent=51 // pred_check_branch
        %656 = sbr.rel (%p654) target = $region56
      $region55: #{anatomical_attention_gate_sum.1} parent=51 // pred_region
        %s657 = smul.u32 2, %s23
      $region56: #{anatomical_attention_gate_sum.1} parent=51 // pred_fallthru
        _
    $region52: #{anatomical_attention_gate_sum.1} parent=5 // pred_fallthru
      _
    %p658 = scmp.le.s32.totalorder 2, %s14
    // Predicated region
    $region57: #{anatomical_attention_gate_sum.1} parent=5 // pred_check
      %p659 = pneg %p658
    $region58: #{anatomical_attention_gate_sum.1} parent=5 // pred_check_branch
      %661 = sbr.rel (%p659) target = $region60
    $region59: #{anatomical_attention_gate_sum.1} parent=5 // pred_region
      %s662 = ssub.s32 %s14, 2
      // Predicated region
      $region61: #{anatomical_attention_gate_sum.1} parent=59 // pred_check
        %p663 = pneg %p239
      $region62: #{anatomical_attention_gate_sum.1} parent=59 // pred_check_branch
        %665 = sbr.rel (%p663) target = $region64
      $region63: #{anatomical_attention_gate_sum.1} parent=59 // pred_region
        %s666 = smul.u32 2, %s25
        %p667 = scmp.lt.s32.totalorder %s26, 1
        %s668 = scalar_select %p667, %s26, 1
        %p669 = scmp.lt.s32.totalorder %s666, 1
        %s670 = scalar_select %p669, %s666, 1
        %s671 = smul.addr %s668, 2
        %s672 = sadd.s32 %s670, %s671
        %s673 = smul.addr %s672, 4
        %s674 = scalar_lea.vmem %s8, %s673
      $region64: #{anatomical_attention_gate_sum.1} parent=59 // pred_fallthru
        _
    $region60: #{anatomical_attention_gate_sum.1} parent=5 // pred_fallthru
      _
  $region6: #{anatomical_attention_gate_sum.1} parent=0 // loop_footer
    %s18 = sadd.s32 1, %s14
  $region7: #{anatomical_attention_gate_sum.1} parent=0 // loop_footer_branch
    %13 = sbr.rel target = $region3
  $region8: #{anatomical_attention_gate_sum.1} parent=0 // loop_exit
    _

</llo_original>
